<compile_context>
chip_gen: v7x
topology: tpu7x:2x2x1
jax: 0.10.0
libtpu: 0.0.40
codegen_flags: <defaults>
</compile_context>

<pallas_src>
import functools

import jax
import jax.numpy as jnp
from jax.experimental import pallas as pl
from jax.experimental.pallas import tpu as pltpu


def _round_up(x, m):
    return (x + m - 1) // m * m


def _make_kernel(use_bf16_mxu):
    compute_dtype = jnp.bfloat16 if use_bf16_mxu else jnp.float32

    def kernel(x_ref, w1_ref, b1_ref, w23_ref, b23_ref, o_ref):
        # ---- conv_1 as one block-diagonal MXU matmul: (TM,192) x (192,512) --
        s1 = jnp.dot(x_ref[...], w1_ref[...],
                     preferred_element_type=jnp.float32) + b1_ref[...]
        # (If the Discriminator ever gains an activation between conv_1 and
        #  conv_2, apply it to `s1` right here.)
        # ---- conv_2 with conv_3 folded in: (TM,512) x (512,128) on the MXU --
        # Only output column 0 is real; columns 1..127 are zero-padding so the
        # result block is lane-dense and stored with unmasked vst.
        out = jnp.dot(s1.astype(compute_dtype), w23_ref[...],
                      preferred_element_type=jnp.float32) + b23_ref[...]
        o_ref[...] = out.astype(o_ref.dtype)

    return kernel


def discriminator_forward(params, x_nchw, *, use_bf16_mxu=True, tm_max=2048):
    """Forward pass of the Discriminator.  x_nchw: (N, 3, H, W) with H, W >= 8.

    use_bf16_mxu=True uses bf16 MXU operands with f32 accumulation (~3x MXU
    throughput); expected deviation from the f32 reference is O(1e-3).
    use_bf16_mxu=False gives exact f32 parity with the PyTorch module.
    """
    w1, b1 = params["conv_1"]
    w2, b2 = params["conv_2"]
    w3, b3 = params["conv_3"]

    N, C, H, W = x_nchw.shape
    c1, c2 = w1.shape[0], w2.shape[0]
    assert w1.shape[1] == C and w2.shape[1] == c1 and w3.shape[1] == c2
    Ho, Wo = H // 8, W // 8
    assert Ho >= 1 and Wo >= 1, "input spatial size must be at least 8x8"

    kc = 4 * C        # layer-1 patch width (kh0, kw0, c) = 12
    K1 = 16 * kc      # full patch width per output position = 192
    K2 = 16 * c1      # layer-1 activation width = 512
    NOUT = 128        # lane-dense padded output width (real output = column 0)
    compute_dtype = jnp.bfloat16 if use_bf16_mxu else jnp.float32

    # ---- host glue: hierarchical space-to-depth at the NCHW API boundary ----
    # Rows ordered (n, ho, wo); columns ordered (kh2, kw2, kh1, kw1, kh0, kw0, c)
    # so every inter-layer "space-to-depth" is a contiguous column range.
    # Cast to compute dtype BEFORE the transpose to halve its bandwidth.
    # TODO(synk): for very large batches, do this space-to-depth in a small
    # preprocessing Pallas kernel instead of an XLA 10-D transpose.
    x = x_nchw[:, :, :Ho * 8, :Wo * 8].astype(compute_dtype)
    p = x.reshape(N, C, Ho, 2, 2, 2, Wo, 2, 2, 2)
    p = p.transpose(0, 2, 6, 3, 7, 4, 8, 5, 9, 1)   # (N,Ho,Wo,kh2,kw2,kh1,kw1,kh0,kw0,C)
    M = N * Ho * Wo
    p0 = p.reshape(M, K1)                            # dense (M, 192) — no lane padding

    # ---- host weight prep ----------------------------------------------------
    # conv_1 -> block-diagonal (192, 512): one MXU matmul produces all 16
    # layer-1 sub-positions at once.
    w1m = w1.transpose(2, 3, 1, 0).reshape(kc, c1)           # rows (kh0, kw0, cin)
    w1bd = jnp.kron(jnp.eye(16, dtype=w1m.dtype), w1m)       # (192, 512)
    b1t = jnp.tile(b1.reshape(1, c1), (1, 16)).astype(jnp.float32)   # (1, 512)

    # conv_3 folded into conv_2:  out = s1 @ W23 + b23
    #   W23[p*128:(p+1)*128, 0] = w2m @ w3_p  for p = (kh2, kw2)
    w2m = w2.transpose(2, 3, 1, 0).reshape(4 * c1, c2)        # (128, 64) rows (kh1,kw1,cin)
    w3m = w3[0].transpose(1, 2, 0).reshape(4, c2)             # (4, 64)   rows (kh2,kw2)
    w23 = jnp.einsum("kc,pc->pk", w2m, w3m).reshape(K2, 1)    # (512, 1)
    w23p = jnp.pad(w23, ((0, 0), (0, NOUT - 1)))              # (512, 128) lane-dense
    b23 = (b2 @ w3m.sum(axis=0) + b3[0]).reshape(1, 1)
    b23p = jnp.pad(b23, ((0, 0), (0, NOUT - 1))).astype(jnp.float32)  # (1, 128)

    w1bd = w1bd.astype(compute_dtype)
    w23p = w23p.astype(compute_dtype)

    # ---- row tiling: big blocks, and >=2 grid steps so v7x's 2 TCs both work
    TM = min(tm_max, _round_up(pl.cdiv(M, 2), 8))
    M_pad = _round_up(M, TM)
    if M_pad != M:
        p0 = jnp.concatenate(
            [p0, jnp.zeros((M_pad - M, K1), p0.dtype)], axis=0)

    kernel = _make_kernel(use_bf16_mxu)

    out = pl.pallas_call(
        kernel,
        out_shape=jax.ShapeDtypeStruct((M_pad, NOUT), jnp.float32),
        grid_spec=pltpu.PrefetchScalarGridSpec(
            num_scalar_prefetch=0,
            grid=(M_pad // TM,),
            in_specs=[
                pl.BlockSpec((TM, K1), lambda i: (i, 0)),     # patches
                pl.BlockSpec((K1, K2), lambda i: (0, 0)),     # block-diag conv_1 weight
                pl.BlockSpec((1, K2), lambda i: (0, 0)),      # tiled conv_1 bias
                pl.BlockSpec((K2, NOUT), lambda i: (0, 0)),   # conv_2 ⊕ conv_3 weight
                pl.BlockSpec((1, NOUT), lambda i: (0, 0)),    # folded bias
            ],
            out_specs=pl.BlockSpec((TM, NOUT), lambda i: (i, 0)),
        ),
        compiler_params=pltpu.CompilerParams(
            dimension_semantics=("parallel",),
            vmem_limit_bytes=32 * 1024 * 1024,
        ),
    )(p0, w1bd, b1t, w23p, b23p)

    # column 0 holds the real result; rows ordered (n, ho, wo) -> NCHW
    return (out[:M, 0].reshape(N, Ho, Wo, 1)
            .transpose(0, 3, 1, 2).astype(x_nchw.dtype))


def init_params(key):
    """Deterministic init mirroring PyTorch Conv2d default (uniform +/- 1/sqrt(fan_in))."""
    def conv_init(k, cout, cin, kh, kw):
        k_w, k_b = jax.random.split(k)
        bound = 1.0 / jnp.sqrt(cin * kh * kw)
        w = jax.random.uniform(k_w, (cout, cin, kh, kw), jnp.float32, -bound, bound)
        b = jax.random.uniform(k_b, (cout,), jnp.float32, -bound, bound)
        return w, b

    k1, k2, k3 = jax.random.split(key, 3)
    return {
        "conv_1": conv_init(k1, 32, 3, 2, 2),
        "conv_2": conv_init(k2, 64, 32, 2, 2),
        "conv_3": conv_init(k3, 1, 64, 2, 2),
    }


def _reference_forward(params, x_nchw):
    """Pure-JAX reference (lax conv) for correctness checking."""
    def conv(x, w, b):
        y = jax.lax.conv_general_dilated(
            x, w, window_strides=(2, 2), padding="VALID",
            dimension_numbers=("NCHW", "OIHW", "NCHW"))
        return y + b.reshape(1, -1, 1, 1)

    x = conv(x_nchw, *params["conv_1"])
    x = conv(x, *params["conv_2"])
    x = conv(x, *params["conv_3"])
    return x


if __name__ == "__main__":
    key = jax.random.PRNGKey(0)
    k_params, k_x = jax.random.split(key)
    params = init_params(k_params)

    # input consistent with nn.Conv2d(3, ...): (N=2, C=3, H=16, W=16)
    x = jax.random.normal(k_x, (2, 3, 16, 16), jnp.float32)

    ref = jax.block_until_ready(_reference_forward(params, x))

    # exact-parity path (f32 MXU operands) — must match the reference tightly
    fwd_f32 = jax.jit(functools.partial(discriminator_forward, use_bf16_mxu=False))
    out_f32 = jax.block_until_ready(fwd_f32(params, x))
    assert out_f32.shape == (2, 1, 2, 2), out_f32.shape
    assert jnp.allclose(out_f32, ref, atol=1e-4, rtol=1e-4), "f32 path mismatch vs lax reference"

    # default fast path (bf16 MXU operands, f32 accumulation) — looser tolerance
    fwd = jax.jit(discriminator_forward)
    out = jax.block_until_ready(fwd(params, x))
    assert out.shape == (2, 1, 2, 2), out.shape
    assert jnp.allclose(out, ref, atol=2e-2, rtol=2e-2), "bf16 path mismatch vs lax reference"

    print("KERNEL_OK")
</pallas_src>

<mosaic_0001>
module attributes {stable_mosaic.version = 11 : i64} {
  func.func @kernel(%arg0: i32, %arg1: memref<8x192xf32, #tpu.memory_space<vmem>>, %arg2: memref<192x512xf32, #tpu.memory_space<vmem>>, %arg3: memref<1x512xf32, #tpu.memory_space<vmem>>, %arg4: memref<512x128xf32, #tpu.memory_space<vmem>>, %arg5: memref<1x128xf32, #tpu.memory_space<vmem>>, %arg6: memref<8x128xf32, #tpu.memory_space<vmem>>) attributes {dimension_semantics = [#tpu.dimension_semantics<parallel>], iteration_bounds = array<i64: 1>, scalar_prefetch = 0 : i64, scratch_operands = 0 : i64, tpu.core_type = #tpu.core_type<tc>, window_params = [{transform_indices = @transform_0, window_bounds = array<i64: 8, 192>}, {pipeline_mode = #tpu.pipeline_mode<synchronous>, transform_indices = @transform_1, window_bounds = array<i64: 192, 512>}, {pipeline_mode = #tpu.pipeline_mode<synchronous>, transform_indices = @transform_2, window_bounds = array<i64: 1, 512>}, {pipeline_mode = #tpu.pipeline_mode<synchronous>, transform_indices = @transform_3, window_bounds = array<i64: 512, 128>}, {pipeline_mode = #tpu.pipeline_mode<synchronous>, transform_indices = @transform_4, window_bounds = array<i64: 1, 128>}, {transform_indices = @transform_5, window_bounds = array<i64: 8, 128>}]} {
    %c0 = arith.constant 0 : index
    %c0_0 = arith.constant 0 : index
    %0 = vector.load %arg1[%c0, %c0_0] : memref<8x192xf32, #tpu.memory_space<vmem>>, vector<8x192xf32>
    %c0_1 = arith.constant 0 : index
    %c0_2 = arith.constant 0 : index
    %1 = vector.load %arg2[%c0_1, %c0_2] : memref<192x512xf32, #tpu.memory_space<vmem>>, vector<192x512xf32>
    %cst = arith.constant dense<0.000000e+00> : vector<8x512xf32>
    %2 = tpu.matmul %0, %1, %cst {dimension_numbers = #tpu.dot_dimension_numbers<[1], [0], [0], [1], [0, 0, 1, 1], [], []>} : vector<8x192xf32>, vector<192x512xf32>, vector<8x512xf32> -> vector<8x512xf32>
    %c0_3 = arith.constant 0 : index
    %c0_4 = arith.constant 0 : index
    %3 = vector.load %arg3[%c0_3, %c0_4] : memref<1x512xf32, #tpu.memory_space<vmem>>, vector<1x512xf32>
    %4 = vector.broadcast %3 : vector<1x512xf32> to vector<8x512xf32>
    %5 = arith.addf %2, %4 : vector<8x512xf32>
    %c0_5 = arith.constant 0 : index
    %c0_6 = arith.constant 0 : index
    %6 = vector.load %arg4[%c0_5, %c0_6] : memref<512x128xf32, #tpu.memory_space<vmem>>, vector<512x128xf32>
    %cst_7 = arith.constant dense<0.000000e+00> : vector<8x128xf32>
    %7 = tpu.matmul %5, %6, %cst_7 {dimension_numbers = #tpu.dot_dimension_numbers<[1], [0], [0], [1], [0, 0, 1, 1], [], []>} : vector<8x512xf32>, vector<512x128xf32>, vector<8x128xf32> -> vector<8x128xf32>
    %c0_8 = arith.constant 0 : index
    %c0_9 = arith.constant 0 : index
    %8 = vector.load %arg5[%c0_8, %c0_9] : memref<1x128xf32, #tpu.memory_space<vmem>>, vector<1x128xf32>
    %9 = vector.broadcast %8 : vector<1x128xf32> to vector<8x128xf32>
    %10 = arith.addf %7, %9 : vector<8x128xf32>
    %c0_10 = arith.constant 0 : index
    %c0_11 = arith.constant 0 : index
    %11 = vector.load %arg6[%c0_10, %c0_11] : memref<8x128xf32, #tpu.memory_space<vmem>>, vector<8x128xf32>
    tpu.vector_store %arg6[%c0_10, %c0_11], %10 {strides = array<i32>} : memref<8x128xf32, #tpu.memory_space<vmem>>, vector<8x128xf32>,
    return
  }
  func.func @transform_0(%arg0: i32) -> (i32, i32) {
    %c0_i32 = arith.constant 0 : i32
    %c0_i32_0 = arith.constant 0 : i32
    return %arg0, %c0_i32 : i32, i32
  }
  func.func @transform_1(%arg0: i32) -> (i32, i32) {
    %c0_i32 = arith.constant 0 : i32
    %c0_i32_0 = arith.constant 0 : i32
    %c0_i32_1 = arith.constant 0 : i32
    return %c0_i32, %c0_i32_0 : i32, i32
  }
  func.func @transform_2(%arg0: i32) -> (i32, i32) {
    %c0_i32 = arith.constant 0 : i32
    %c0_i32_0 = arith.constant 0 : i32
    %c0_i32_1 = arith.constant 0 : i32
    return %c0_i32, %c0_i32_0 : i32, i32
  }
  func.func @transform_3(%arg0: i32) -> (i32, i32) {
    %c0_i32 = arith.constant 0 : i32
    %c0_i32_0 = arith.constant 0 : i32
    %c0_i32_1 = arith.constant 0 : i32
    return %c0_i32, %c0_i32_0 : i32, i32
  }
  func.func @transform_4(%arg0: i32) -> (i32, i32) {
    %c0_i32 = arith.constant 0 : i32
    %c0_i32_0 = arith.constant 0 : i32
    %c0_i32_1 = arith.constant 0 : i32
    return %c0_i32, %c0_i32_0 : i32, i32
  }
  func.func @transform_5(%arg0: i32) -> (i32, i32) {
    %c0_i32 = arith.constant 0 : i32
    %c0_i32_0 = arith.constant 0 : i32
    return %arg0, %c0_i32 : i32, i32
  }
}

</mosaic_0001>

<llo_original>
// kernel: mul.4
$region0: #{mul.4}
  %s0 = inlined_call_operand.vmem [shape: f32[2,2,3,32], index: 0, kind: input, shape index: {}]
  %s1 = inlined_call_operand.vmem [shape: f32[12,32], index: 1, kind: output, shape index: {}]
  $region1: #{mul.4} parent=0
    #allocation0 [shape = 'u8[16384]{0}', space=vmem, size = 0x4000, scoped, tag = 'scoped mem for input reshape']
    %s3 = sshllo.u32 0, 4
    %s4 = smul.addr 4, 3
    %s5 = scalar_lea.vmem %s0, %s4
    %v6 = vld [vmem:[%s5] sm:%s3]
    %s7 = scalar_lea.vmem [#allocation0], 24
    %8 = vst [vmem:[%s7] sm:%s3] %v6
    %s9 = smul.addr 4, 2
    %s10 = scalar_lea.vmem %s0, %s9
    %v11 = vld [vmem:[%s10] sm:%s3]
    %s12 = scalar_lea.vmem [#allocation0], 16
    %13 = vst [vmem:[%s12] sm:%s3] %v11
    %s14 = scalar_lea.vmem %s0, 4
    %v15 = vld [vmem:[%s14] sm:%s3]
    %s16 = scalar_lea.vmem [#allocation0], 8
    %17 = vst [vmem:[%s16] sm:%s3] %v15
    %v18 = vld [vmem:[%s0] sm:%s3]
    %19 = vst [vmem:[#allocation0] sm:%s3] %v18
    %v20 = vld [vmem:[#allocation0] sm:$0x7]
    %vm21 = vcmask 261120
    %22 = vst.msk [vmem:[%s1] sm:$0x7] %vm21, %v20
    %s23 = scalar_lea.vmem [#allocation0], 8
    %v24 = vld [vmem:[%s23] sm:$0x7]
    %vm25 = vcmask 261120
    %s26 = scalar_lea.vmem %s1, 3
    %27 = vst.msk [vmem:[%s26] sm:$0x7] %vm25, %v24
    %s28 = scalar_lea.vmem [#allocation0], 16
    %v29 = vld [vmem:[%s28] sm:$0x7]
    %vm30 = vcmask 261120
    %s31 = scalar_lea.vmem %s1, 6
    %32 = vst.msk [vmem:[%s31] sm:$0x7] %vm30, %v29
    %s33 = scalar_lea.vmem [#allocation0], 24
    %v34 = vld [vmem:[%s33] sm:$0x7]
    %vm35 = vcmask 261120
    %s36 = scalar_lea.vmem %s1, 9
    %37 = vst.msk [vmem:[%s36] sm:$0x7] %vm35, %v34

// kernel: squeeze.5
$region0: #{squeeze.5}
  %s0 = inlined_call_operand.vmem [shape: f32[8], index: 0, kind: input, shape index: {}]
  %s1 = inlined_call_operand.hbm [shape: f32[2,1,2,2], index: 1, kind: output, shape index: {}]
  $region1: #{squeeze.5} parent=0
    #allocation0 [shape = 'u8[2048]{0}', space=vmem, size = 0x800, scoped, tag = 'operand span for operand 1']
    #allocation1 [shape = 's32[1]{0}', space=sflag, size = 0x4, scoped, tag = 'scoped memory for squeeze.5']
    #allocation2 [shape = 'u8[8192]{0}', space=vmem, size = 0x2000, scoped, tag = 'scoped mem for output reshape']
    #allocation3 [shape = 'u8[4096]{0}', space=vmem, size = 0x1000, scoped, tag = 'scoped mem for input reshape']
    %2 = vsyncpa [#allocation1], 0
    %s4 = sshllo.u32 0, 1
    %v5 = vld [vmem:[%s0] sm:%s4]
    %6 = vst [vmem:[#allocation3] sm:%s4] %v5
    %v7 = vld [vmem:[#allocation3] sm:$0x1]
    %vm8 = vcmask 15360
    %9 = vst.msk [vmem:[#allocation2] sm:$0x1] %vm8, %v7
    %v10 = vld [vmem:[#allocation3] sm:$0x1]
    %11 = vrot.lane.b32.xlu0 %v10, 126
    %v12 = vpop.permute.xlu0 %11
    %vm13 = vcmask 15360
    %s14 = scalar_lea.vmem [#allocation2], 1
    %15 = vst.msk [vmem:[%s14] sm:$0x1] %vm13, %v12
    %v16 = vld [vmem:[#allocation3] sm:$0x1]
    %17 = vrot.lane.b32.xlu0 %v16, 124
    %v18 = vpop.permute.xlu0 %17
    %vm19 = vcmask 15360
    %s20 = scalar_lea.vmem [#allocation2], 8
    %21 = vst.msk [vmem:[%s20] sm:$0x1] %vm19, %v18
    %v22 = vld [vmem:[#allocation3] sm:$0x1]
    %23 = vrot.lane.b32.xlu0 %v22, 122
    %v24 = vpop.permute.xlu0 %23
    %vm25 = vcmask 15360
    %s26 = scalar_lea.vmem [#allocation2], 9
    %27 = vst.msk [vmem:[%s26] sm:$0x1] %vm25, %v24
    %s29 = sshllo.u32 0, 2
    %v31 = vld [vmem:[#allocation2] sm:%s29]
    %s32 = sshllo.u32 0, 2
    %33 = vst [vmem:[#allocation0] sm:%s32] %v31
    %s34 = scalar_lea.vmem [#allocation2], 8
    %v35 = vld [vmem:[%s34] sm:%s29]
    %s36 = sshllo.u32 0, 2
    %s37 = scalar_lea.vmem [#allocation0], 2
    %38 = vst [vmem:[%s37] sm:%s36] %v35
    %s40 = ssub.s32 64, 64
    %41 = vsyncadd [#allocation1], %s40
    %s43 = sshll.u32 [#allocation0], 4
    %s44 = int_to_ptr.vmem [resolvable:$true] %s43
    %46 = dma.vmem_to_hbm [thread:$0]  %s44, 64, %s1, [#allocation1]
    %47 = dma.done [#allocation1], 64
    %48 = vsyncpa [#allocation1], 1

// kernel: discriminator_forward.1
$region0: #{discriminator_forward.1}
  #allocation0 [shape = 'u32[]', space=smem, size = 0x4, offset = 0x4, fixed_abs, tag = 'smem constant byte address 0x4 - core index']
  #allocation1 [shape = 'u32[144,128]{1,0:T(1,128)}', space=vmem, size = 0x12000, scoped, tag = 'internal scratch']
  %s0 = inlined_call_operand.vmem [shape: f32[8,192], index: 0, kind: input, shape index: {}]
  %s1 = inlined_call_operand.vmem [shape: f32[192,512], index: 1, kind: input, shape index: {}]
  %s2 = inlined_call_operand.vmem [shape: f32[1,512], index: 2, kind: input, shape index: {}]
  %s3 = inlined_call_operand.vmem [shape: f32[512,128], index: 3, kind: input, shape index: {}]
  %s4 = inlined_call_operand.vmem [shape: f32[1,128], index: 4, kind: input, shape index: {}]
  %s5 = inlined_call_operand.vmem [shape: f32[8,128], index: 5, kind: output, shape index: {}]
  %s6 = sld [smem:[#allocation0]]
  $region30: #{discriminator_forward.1} parent=0
    _
  %s8 = ssub.s32 1, %s6
  %s9 = scalar_select 0, %s8, %s6
  // Predicated region
  $region2: #{discriminator_forward.1} parent=0 // pred_check
    _
  $region3: #{discriminator_forward.1} parent=0 // pred_check_branch
    %11 = sbr.rel (0) target = $region5
  $region4: #{discriminator_forward.1} parent=0 // pred_region
    _
  $region5: #{discriminator_forward.1} parent=0 // pred_fallthru
    _
  // Predicated region
  $region6: #{discriminator_forward.1} parent=0 // pred_check
    _
  $region7: #{discriminator_forward.1} parent=0 // pred_check_branch
    %13 = sbr.rel (0) target = $region9
  $region8: #{discriminator_forward.1} parent=0 // pred_region
    _
  $region9: #{discriminator_forward.1} parent=0 // pred_fallthru
    _
  // Predicated region
  $region10: #{discriminator_forward.1} parent=0 // pred_check
    _
  $region11: #{discriminator_forward.1} parent=0 // pred_check_branch
    %15 = sbr.rel (0) target = $region13
  $region12: #{discriminator_forward.1} parent=0 // pred_region
    _
  $region13: #{discriminator_forward.1} parent=0 // pred_fallthru
    _
  // Predicated region
  $region14: #{discriminator_forward.1} parent=0 // pred_check
    _
  $region15: #{discriminator_forward.1} parent=0 // pred_check_branch
    %17 = sbr.rel (0) target = $region17
  $region16: #{discriminator_forward.1} parent=0 // pred_region
    _
  $region17: #{discriminator_forward.1} parent=0 // pred_fallthru
    _
  // Predicated region
  $region18: #{discriminator_forward.1} parent=0 // pred_check
    _
  $region19: #{discriminator_forward.1} parent=0 // pred_check_branch
    %19 = sbr.rel (0) target = $region21
  $region20: #{discriminator_forward.1} parent=0 // pred_region
    _
  $region21: #{discriminator_forward.1} parent=0 // pred_fallthru
    _
  %v20 = vld [vmem:[%s0] sm:$0xff]
  %v21 = vld [vmem:[%s0 + $0x8] sm:$0xff]
  %v22 = vld [vmem:[%s1] sm:$0xff]
  %v23 = vld [vmem:[%s1 + $0x8] sm:$0xff]
  %v24 = vld [vmem:[%s1 + $0x10] sm:$0xff]
  %v25 = vld [vmem:[%s1 + $0x18] sm:$0xff]
  %v26 = vld [vmem:[%s1 + $0x20] sm:$0xff]
  %v27 = vld [vmem:[%s1 + $0x28] sm:$0xff]
  %v28 = vld [vmem:[%s1 + $0x30] sm:$0xff]
  %v29 = vld [vmem:[%s1 + $0x38] sm:$0xff]
  %v30 = vld [vmem:[%s1 + $0x40] sm:$0xff]
  %v31 = vld [vmem:[%s1 + $0x48] sm:$0xff]
  %v32 = vld [vmem:[%s1 + $0x50] sm:$0xff]
  %v33 = vld [vmem:[%s1 + $0x58] sm:$0xff]
  %v34 = vld [vmem:[%s1 + $0x60] sm:$0xff]
  %v35 = vld [vmem:[%s1 + $0x68] sm:$0xff]
  %v36 = vld [vmem:[%s1 + $0x70] sm:$0xff]
  %v37 = vld [vmem:[%s1 + $0x78] sm:$0xff]
  %v38 = vld [vmem:[%s1 + $0x80] sm:$0xff]
  %v39 = vld [vmem:[%s1 + $0x88] sm:$0xff]
  %v40 = vld [vmem:[%s1 + $0x90] sm:$0xff]
  %v41 = vld [vmem:[%s1 + $0x98] sm:$0xff]
  %v42 = vld [vmem:[%s1 + $0xa0] sm:$0xff]
  %v43 = vld [vmem:[%s1 + $0xa8] sm:$0xff]
  %v44 = vld [vmem:[%s1 + $0xb0] sm:$0xff]
  %v45 = vld [vmem:[%s1 + $0xb8] sm:$0xff]
  %v46 = vld [vmem:[%s1 + $0xc0] sm:$0xff]
  %v47 = vld [vmem:[%s1 + $0xc8] sm:$0xff]
  %v48 = vld [vmem:[%s1 + $0xd0] sm:$0xff]
  %v49 = vld [vmem:[%s1 + $0xd8] sm:$0xff]
  %v50 = vld [vmem:[%s1 + $0xe0] sm:$0xff]
  %v51 = vld [vmem:[%s1 + $0xe8] sm:$0xff]
  %v52 = vld [vmem:[%s1 + $0xf0] sm:$0xff]
  %v53 = vld [vmem:[%s1 + $0xf8] sm:$0xff]
  %v54 = vld [vmem:[%s1 + $0x100] sm:$0xff]
  %v55 = vld [vmem:[%s1 + $0x108] sm:$0xff]
  %v56 = vld [vmem:[%s1 + $0x110] sm:$0xff]
  %v57 = vld [vmem:[%s1 + $0x118] sm:$0xff]
  %v58 = vld [vmem:[%s1 + $0x120] sm:$0xff]
  %v59 = vld [vmem:[%s1 + $0x128] sm:$0xff]
  %v60 = vld [vmem:[%s1 + $0x130] sm:$0xff]
  %v61 = vld [vmem:[%s1 + $0x138] sm:$0xff]
  %v62 = vld [vmem:[%s1 + $0x140] sm:$0xff]
  %v63 = vld [vmem:[%s1 + $0x148] sm:$0xff]
  %v64 = vld [vmem:[%s1 + $0x150] sm:$0xff]
  %v65 = vld [vmem:[%s1 + $0x158] sm:$0xff]
  %v66 = vld [vmem:[%s1 + $0x160] sm:$0xff]
  %v67 = vld [vmem:[%s1 + $0x168] sm:$0xff]
  %v68 = vld [vmem:[%s1 + $0x170] sm:$0xff]
  %v69 = vld [vmem:[%s1 + $0x178] sm:$0xff]
  %v70 = vld [vmem:[%s1 + $0x180] sm:$0xff]
  %v71 = vld [vmem:[%s1 + $0x188] sm:$0xff]
  %v72 = vld [vmem:[%s1 + $0x190] sm:$0xff]
  %v73 = vld [vmem:[%s1 + $0x198] sm:$0xff]
  %v74 = vld [vmem:[%s1 + $0x1a0] sm:$0xff]
  %v75 = vld [vmem:[%s1 + $0x1a8] sm:$0xff]
  %v76 = vld [vmem:[%s1 + $0x1b0] sm:$0xff]
  %v77 = vld [vmem:[%s1 + $0x1b8] sm:$0xff]
  %v78 = vld [vmem:[%s1 + $0x1c0] sm:$0xff]
  %v79 = vld [vmem:[%s1 + $0x1c8] sm:$0xff]
  %v80 = vld [vmem:[%s1 + $0x1d0] sm:$0xff]
  %v81 = vld [vmem:[%s1 + $0x1d8] sm:$0xff]
  %v82 = vld [vmem:[%s1 + $0x1e0] sm:$0xff]
  %v83 = vld [vmem:[%s1 + $0x1e8] sm:$0xff]
  %v84 = vld [vmem:[%s1 + $0x1f0] sm:$0xff]
  %v85 = vld [vmem:[%s1 + $0x1f8] sm:$0xff]
  %v86 = vld [vmem:[%s1 + $0x200] sm:$0xff]
  %v87 = vld [vmem:[%s1 + $0x208] sm:$0xff]
  %v88 = vld [vmem:[%s1 + $0x210] sm:$0xff]
  %v89 = vld [vmem:[%s1 + $0x218] sm:$0xff]
  %v90 = vld [vmem:[%s1 + $0x220] sm:$0xff]
  %v91 = vld [vmem:[%s1 + $0x228] sm:$0xff]
  %v92 = vld [vmem:[%s1 + $0x230] sm:$0xff]
  %v93 = vld [vmem:[%s1 + $0x238] sm:$0xff]
  %v94 = vld [vmem:[%s1 + $0x240] sm:$0xff]
  %v95 = vld [vmem:[%s1 + $0x248] sm:$0xff]
  %v96 = vld [vmem:[%s1 + $0x250] sm:$0xff]
  %v97 = vld [vmem:[%s1 + $0x258] sm:$0xff]
  %v98 = vld [vmem:[%s1 + $0x260] sm:$0xff]
  %v99 = vld [vmem:[%s1 + $0x268] sm:$0xff]
  %v100 = vld [vmem:[%s1 + $0x270] sm:$0xff]
  %v101 = vld [vmem:[%s1 + $0x278] sm:$0xff]
  %v102 = vld [vmem:[%s1 + $0x280] sm:$0xff]
  %v103 = vld [vmem:[%s1 + $0x288] sm:$0xff]
  %v104 = vld [vmem:[%s1 + $0x290] sm:$0xff]
  %v105 = vld [vmem:[%s1 + $0x298] sm:$0xff]
  %v106 = vld [vmem:[%s1 + $0x2a0] sm:$0xff]
  %v107 = vld [vmem:[%s1 + $0x2a8] sm:$0xff]
  %v108 = vld [vmem:[%s1 + $0x2b0] sm:$0xff]
  %v109 = vld [vmem:[%s1 + $0x2b8] sm:$0xff]
  %v110 = vld [vmem:[%s1 + $0x2c0] sm:$0xff]
  %v111 = vld [vmem:[%s1 + $0x2c8] sm:$0xff]
  %v112 = vld [vmem:[%s1 + $0x2d0] sm:$0xff]
  %v113 = vld [vmem:[%s1 + $0x2d8] sm:$0xff]
  %v114 = vld [vmem:[%s1 + $0x2e0] sm:$0xff]
  %v115 = vld [vmem:[%s1 + $0x2e8] sm:$0xff]
  %v116 = vld [vmem:[%s1 + $0x2f0] sm:$0xff]
  %v117 = vld [vmem:[%s1 + $0x2f8] sm:$0xff]
  %v118 = vld [vmem:[%s2] sm:$0xf]
  %v120 = vlaneseq
  %v121 = vshrl.u32 %v120, 7
  %v122 = vsub.s32 0, %v121
  %v123 = vrot.slane %v118, %v122
  %v124 = vlaneseq
  %v125 = vshrl.u32 %v124, 7
  %v126 = vsub.s32 1, %v125
  %v127 = vrot.slane %v118, %v126
  %v128 = vlaneseq
  %v129 = vshrl.u32 %v128, 7
  %v130 = vsub.s32 2, %v129
  %v131 = vrot.slane %v118, %v130
  %v132 = vlaneseq
  %v133 = vshrl.u32 %v132, 7
  %v134 = vsub.s32 3, %v133
  %v135 = vrot.slane %v118, %v134
  %vm140 = vcmask 523264
  %v142 = vsel %vm140, %v21, 0
  %144 = vmatprep.subr.mxu0 %v23
  %145 = vmatpush1.msra.mxu0 %v22
  %146 = vmatprep.subr.mxu0 %v27
  %147 = vmatpush1.msra.mxu0 %v26
  %148 = vmatprep.subr.mxu0 %v31
  %149 = vmatpush1.msra.mxu0 %v30
  %150 = vmatprep.subr.mxu0 %v35
  %151 = vmatpush1.msra.mxu0 %v34
  %152 = vmatprep.subr.mxu0 %v39
  %153 = vmatpush1.msra.mxu0 %v38
  %154 = vmatprep.subr.mxu0 %v43
  %155 = vmatpush1.msra.mxu0 %v42
  %156 = vmatprep.subr.mxu0 %v47
  %157 = vmatpush1.msra.mxu0 %v46
  %158 = vmatprep.subr.mxu0 %v51
  %159 = vmatpush1.msra.mxu0 %v50
  %160 = vmatprep.subr.mxu0 %v55
  %161 = vmatpush1.msra.mxu0 %v54
  %162 = vmatprep.subr.mxu0 %v59
  %163 = vmatpush1.msra.mxu0 %v58
  %164 = vmatprep.subr.mxu0 %v63
  %165 = vmatpush1.msra.mxu0 %v62
  %166 = vmatprep.subr.mxu0 %v67
  %167 = vmatpush1.msra.mxu0 %v66
  %168 = vmatprep.subr.mxu0 %v71
  %169 = vmatpush1.msra.mxu0 %v70
  %170 = vmatprep.subr.mxu0 %v75
  %171 = vmatpush1.msra.mxu0 %v74
  %172 = vmatprep.subr.mxu0 %v79
  %173 = vmatpush1.msra.mxu0 %v78
  %174 = vmatprep.subr.mxu0 %v83
  %175 = vmatpush1.msra.mxu0 %v82
  %176 = vmatprep.subr.mxu0 %v87
  %177 = vmatpush1.msra.mxu0 %v86
  %178 = vmatprep.subr.mxu0 %v91
  %179 = vmatpush1.msra.mxu0 %v90
  %180 = vmatprep.subr.mxu0 %v95
  %181 = vmatpush1.msra.mxu0 %v94
  %182 = vmatprep.subr.mxu0 %v99
  %183 = vmatpush1.msra.mxu0 %v98
  %184 = vmatprep.subr.mxu0 %v103
  %185 = vmatpush1.msra.mxu0 %v102
  %186 = vmatprep.subr.mxu0 %v107
  %187 = vmatpush1.msra.mxu0 %v106
  %188 = vmatprep.subr.mxu0 %v111
  %189 = vmatpush1.msra.mxu0 %v110
  %190 = vmatprep.subr.mxu0 %v115
  %191 = vmatpush1.msra.mxu0 %v114
  %192 = vmatprep.subr.mxu0 0.0
  %193 = vmatpush1.msra.mxu0 0.0
  %194 = vmatprep.subr.mxu0 0.0
  %195 = vmatpush1.msra.mxu0 0.0
  %196 = vmatprep.subr.mxu0 0.0
  %197 = vmatpush1.msra.mxu0 0.0
  %198 = vmatprep.subr.mxu0 0.0
  %199 = vmatpush1.msra.mxu0 0.0
  %200 = vmatprep.subr.mxu0 0.0
  %201 = vmatpush1.msra.mxu0 0.0
  %202 = vmatprep.subr.mxu0 0.0
  %203 = vmatpush1.msra.mxu0 0.0
  %204 = vmatprep.subr.mxu0 0.0
  %205 = vmatpush1.msra.mxu0 0.0
  %206 = vmatprep.subr.mxu0 0.0
  %207 = vmatpush1.msra.mxu0 0.0
  %208 = vmatprep.mubr.f32.mxu0 %v142
  %209 = vmatmul.mubr.f32.gmra.mrb[0].mxu0 %v20
  %v210 = vpop.f32.mrb[0].mxu0
  %v211 = vadd.f32 %v123, %v210
  %v212 = vpop.f32.mrb[0].mxu0
  %v213 = vadd.f32 %v127, %v212
  %214 = vdwg.mxu0
  %215 = vmatprep.subr.mxu0 %v25
  %216 = vmatpush1.msra.mxu0 %v24
  %217 = vmatprep.subr.mxu0 %v29
  %218 = vmatpush1.msra.mxu0 %v28
  %219 = vmatprep.subr.mxu0 %v33
  %220 = vmatpush1.msra.mxu0 %v32
  %221 = vmatprep.subr.mxu0 %v37
  %222 = vmatpush1.msra.mxu0 %v36
  %223 = vmatprep.subr.mxu0 %v41
  %224 = vmatpush1.msra.mxu0 %v40
  %225 = vmatprep.subr.mxu0 %v45
  %226 = vmatpush1.msra.mxu0 %v44
  %227 = vmatprep.subr.mxu0 %v49
  %228 = vmatpush1.msra.mxu0 %v48
  %229 = vmatprep.subr.mxu0 %v53
  %230 = vmatpush1.msra.mxu0 %v52
  %231 = vmatprep.subr.mxu0 %v57
  %232 = vmatpush1.msra.mxu0 %v56
  %233 = vmatprep.subr.mxu0 %v61
  %234 = vmatpush1.msra.mxu0 %v60
  %235 = vmatprep.subr.mxu0 %v65
  %236 = vmatpush1.msra.mxu0 %v64
  %237 = vmatprep.subr.mxu0 %v69
  %238 = vmatpush1.msra.mxu0 %v68
  %239 = vmatprep.subr.mxu0 %v73
  %240 = vmatpush1.msra.mxu0 %v72
  %241 = vmatprep.subr.mxu0 %v77
  %242 = vmatpush1.msra.mxu0 %v76
  %243 = vmatprep.subr.mxu0 %v81
  %244 = vmatpush1.msra.mxu0 %v80
  %245 = vmatprep.subr.mxu0 %v85
  %246 = vmatpush1.msra.mxu0 %v84
  %247 = vmatprep.subr.mxu0 %v89
  %248 = vmatpush1.msra.mxu0 %v88
  %249 = vmatprep.subr.mxu0 %v93
  %250 = vmatpush1.msra.mxu0 %v92
  %251 = vmatprep.subr.mxu0 %v97
  %252 = vmatpush1.msra.mxu0 %v96
  %253 = vmatprep.subr.mxu0 %v101
  %254 = vmatpush1.msra.mxu0 %v100
  %255 = vmatprep.subr.mxu0 %v105
  %256 = vmatpush1.msra.mxu0 %v104
  %257 = vmatprep.subr.mxu0 %v109
  %258 = vmatpush1.msra.mxu0 %v108
  %259 = vmatprep.subr.mxu0 %v113
  %260 = vmatpush1.msra.mxu0 %v112
  %261 = vmatprep.subr.mxu0 %v117
  %262 = vmatpush1.msra.mxu0 %v116
  %263 = vmatprep.subr.mxu0 0.0
  %264 = vmatpush1.msra.mxu0 0.0
  %265 = vmatprep.subr.mxu0 0.0
  %266 = vmatpush1.msra.mxu0 0.0
  %267 = vmatprep.subr.mxu0 0.0
  %268 = vmatpush1.msra.mxu0 0.0
  %269 = vmatprep.subr.mxu0 0.0
  %270 = vmatpush1.msra.mxu0 0.0
  %271 = vmatprep.subr.mxu0 0.0
  %272 = vmatpush1.msra.mxu0 0.0
  %273 = vmatprep.subr.mxu0 0.0
  %274 = vmatpush1.msra.mxu0 0.0
  %275 = vmatprep.subr.mxu0 0.0
  %276 = vmatpush1.msra.mxu0 0.0
  %277 = vmatprep.subr.mxu0 0.0
  %278 = vmatpush1.msra.mxu0 0.0
  %279 = vmatprep.mubr.f32.mxu0 %v142
  %280 = vmatmul.mubr.f32.gmra.mrb[0].mxu0 %v20
  %v281 = vpop.f32.mrb[0].mxu0
  %v282 = vadd.f32 %v131, %v281
  %v283 = vpop.f32.mrb[0].mxu0
  %v284 = vadd.f32 %v135, %v283
  %285 = vdwg.mxu0
  %v286 = vld [vmem:[%s3] sm:$0xff]
  %v287 = vld [vmem:[%s3 + $0x8] sm:$0xff]
  %v288 = vld [vmem:[%s3 + $0x10] sm:$0xff]
  %v289 = vld [vmem:[%s3 + $0x18] sm:$0xff]
  %v290 = vld [vmem:[%s3 + $0x20] sm:$0xff]
  %v291 = vld [vmem:[%s3 + $0x28] sm:$0xff]
  %v292 = vld [vmem:[%s3 + $0x30] sm:$0xff]
  %v293 = vld [vmem:[%s3 + $0x38] sm:$0xff]
  %v294 = vld [vmem:[%s3 + $0x40] sm:$0xff]
  %v295 = vld [vmem:[%s3 + $0x48] sm:$0xff]
  %v296 = vld [vmem:[%s3 + $0x50] sm:$0xff]
  %v297 = vld [vmem:[%s3 + $0x58] sm:$0xff]
  %v298 = vld [vmem:[%s3 + $0x60] sm:$0xff]
  %v299 = vld [vmem:[%s3 + $0x68] sm:$0xff]
  %v300 = vld [vmem:[%s3 + $0x70] sm:$0xff]
  %v301 = vld [vmem:[%s3 + $0x78] sm:$0xff]
  %v302 = vld [vmem:[%s3 + $0x80] sm:$0xff]
  %v303 = vld [vmem:[%s3 + $0x88] sm:$0xff]
  %v304 = vld [vmem:[%s3 + $0x90] sm:$0xff]
  %v305 = vld [vmem:[%s3 + $0x98] sm:$0xff]
  %v306 = vld [vmem:[%s3 + $0xa0] sm:$0xff]
  %v307 = vld [vmem:[%s3 + $0xa8] sm:$0xff]
  %v308 = vld [vmem:[%s3 + $0xb0] sm:$0xff]
  %v309 = vld [vmem:[%s3 + $0xb8] sm:$0xff]
  %v310 = vld [vmem:[%s3 + $0xc0] sm:$0xff]
  %v311 = vld [vmem:[%s3 + $0xc8] sm:$0xff]
  %v312 = vld [vmem:[%s3 + $0xd0] sm:$0xff]
  %v313 = vld [vmem:[%s3 + $0xd8] sm:$0xff]
  %v314 = vld [vmem:[%s3 + $0xe0] sm:$0xff]
  %v315 = vld [vmem:[%s3 + $0xe8] sm:$0xff]
  %v316 = vld [vmem:[%s3 + $0xf0] sm:$0xff]
  %v317 = vld [vmem:[%s3 + $0xf8] sm:$0xff]
  %v318 = vld [vmem:[%s3 + $0x100] sm:$0xff]
  %v319 = vld [vmem:[%s3 + $0x108] sm:$0xff]
  %v320 = vld [vmem:[%s3 + $0x110] sm:$0xff]
  %v321 = vld [vmem:[%s3 + $0x118] sm:$0xff]
  %v322 = vld [vmem:[%s3 + $0x120] sm:$0xff]
  %v323 = vld [vmem:[%s3 + $0x128] sm:$0xff]
  %v324 = vld [vmem:[%s3 + $0x130] sm:$0xff]
  %v325 = vld [vmem:[%s3 + $0x138] sm:$0xff]
  %v326 = vld [vmem:[%s3 + $0x140] sm:$0xff]
  %v327 = vld [vmem:[%s3 + $0x148] sm:$0xff]
  %v328 = vld [vmem:[%s3 + $0x150] sm:$0xff]
  %v329 = vld [vmem:[%s3 + $0x158] sm:$0xff]
  %v330 = vld [vmem:[%s3 + $0x160] sm:$0xff]
  %v331 = vld [vmem:[%s3 + $0x168] sm:$0xff]
  %v332 = vld [vmem:[%s3 + $0x170] sm:$0xff]
  %v333 = vld [vmem:[%s3 + $0x178] sm:$0xff]
  %v334 = vld [vmem:[%s3 + $0x180] sm:$0xff]
  %v335 = vld [vmem:[%s3 + $0x188] sm:$0xff]
  %v336 = vld [vmem:[%s3 + $0x190] sm:$0xff]
  %v337 = vld [vmem:[%s3 + $0x198] sm:$0xff]
  %v338 = vld [vmem:[%s3 + $0x1a0] sm:$0xff]
  %v339 = vld [vmem:[%s3 + $0x1a8] sm:$0xff]
  %v340 = vld [vmem:[%s3 + $0x1b0] sm:$0xff]
  %v341 = vld [vmem:[%s3 + $0x1b8] sm:$0xff]
  %v342 = vld [vmem:[%s3 + $0x1c0] sm:$0xff]
  %v343 = vld [vmem:[%s3 + $0x1c8] sm:$0xff]
  %v344 = vld [vmem:[%s3 + $0x1d0] sm:$0xff]
  %v345 = vld [vmem:[%s3 + $0x1d8] sm:$0xff]
  %v346 = vld [vmem:[%s3 + $0x1e0] sm:$0xff]
  %v347 = vld [vmem:[%s3 + $0x1e8] sm:$0xff]
  %v348 = vld [vmem:[%s3 + $0x1f0] sm:$0xff]
  %v349 = vld [vmem:[%s3 + $0x1f8] sm:$0xff]
  %v350 = vld [vmem:[%s4] sm:$0x1]
  %v352 = vlaneseq
  %v353 = vshrl.u32 %v352, 7
  %v354 = vsub.s32 0, %v353
  %v355 = vrot.slane %v350, %v354
  %357 = vmatprep.subr.mxu0 0.0
  %358 = vmatpush1.msra.mxu0 %v286
  %359 = vmatprep.subr.mxu0 0.0
  %360 = vmatpush1.msra.mxu0 %v287
  %361 = vmatprep.subr.mxu0 0.0
  %362 = vmatpush1.msra.mxu0 %v288
  %363 = vmatprep.subr.mxu0 0.0
  %364 = vmatpush1.msra.mxu0 %v289
  %365 = vmatprep.subr.mxu0 0.0
  %366 = vmatpush1.msra.mxu0 %v290
  %367 = vmatprep.subr.mxu0 0.0
  %368 = vmatpush1.msra.mxu0 %v291
  %369 = vmatprep.subr.mxu0 0.0
  %370 = vmatpush1.msra.mxu0 %v292
  %371 = vmatprep.subr.mxu0 0.0
  %372 = vmatpush1.msra.mxu0 %v293
  %373 = vmatprep.subr.mxu0 0.0
  %374 = vmatpush1.msra.mxu0 %v294
  %375 = vmatprep.subr.mxu0 0.0
  %376 = vmatpush1.msra.mxu0 %v295
  %377 = vmatprep.subr.mxu0 0.0
  %378 = vmatpush1.msra.mxu0 %v296
  %379 = vmatprep.subr.mxu0 0.0
  %380 = vmatpush1.msra.mxu0 %v297
  %381 = vmatprep.subr.mxu0 0.0
  %382 = vmatpush1.msra.mxu0 %v298
  %383 = vmatprep.subr.mxu0 0.0
  %384 = vmatpush1.msra.mxu0 %v299
  %385 = vmatprep.subr.mxu0 0.0
  %386 = vmatpush1.msra.mxu0 %v300
  %387 = vmatprep.subr.mxu0 0.0
  %388 = vmatpush1.msra.mxu0 %v301
  %389 = vmatprep.subr.mxu0 0.0
  %390 = vmatpush1.msra.mxu0 %v302
  %391 = vmatprep.subr.mxu0 0.0
  %392 = vmatpush1.msra.mxu0 %v303
  %393 = vmatprep.subr.mxu0 0.0
  %394 = vmatpush1.msra.mxu0 %v304
  %395 = vmatprep.subr.mxu0 0.0
  %396 = vmatpush1.msra.mxu0 %v305
  %397 = vmatprep.subr.mxu0 0.0
  %398 = vmatpush1.msra.mxu0 %v306
  %399 = vmatprep.subr.mxu0 0.0
  %400 = vmatpush1.msra.mxu0 %v307
  %401 = vmatprep.subr.mxu0 0.0
  %402 = vmatpush1.msra.mxu0 %v308
  %403 = vmatprep.subr.mxu0 0.0
  %404 = vmatpush1.msra.mxu0 %v309
  %405 = vmatprep.subr.mxu0 0.0
  %406 = vmatpush1.msra.mxu0 %v310
  %407 = vmatprep.subr.mxu0 0.0
  %408 = vmatpush1.msra.mxu0 %v311
  %409 = vmatprep.subr.mxu0 0.0
  %410 = vmatpush1.msra.mxu0 %v312
  %411 = vmatprep.subr.mxu0 0.0
  %412 = vmatpush1.msra.mxu0 %v313
  %413 = vmatprep.subr.mxu0 0.0
  %414 = vmatpush1.msra.mxu0 %v314
  %415 = vmatprep.subr.mxu0 0.0
  %416 = vmatpush1.msra.mxu0 %v315
  %417 = vmatprep.subr.mxu0 0.0
  %418 = vmatpush1.msra.mxu0 %v316
  %419 = vmatprep.subr.mxu0 0.0
  %420 = vmatpush1.msra.mxu0 %v317
  %421 = vmatprep.mubr.f32.mxu0 %v213
  %422 = vmatmul.mubr.f32.gmra.mrb[0].mxu0 %v211
  %v423 = vpop.f32.mrb[0].mxu0
  %v424 = vadd.f32 %v355, %v423
  %v425 = vpop.f32.mrb[0].mxu0
  %426 = vdwg.mxu0
  %427 = vmatprep.subr.mxu0 0.0
  %428 = vmatpush1.msra.mxu0 %v318
  %429 = vmatprep.subr.mxu0 0.0
  %430 = vmatpush1.msra.mxu0 %v319
  %431 = vmatprep.subr.mxu0 0.0
  %432 = vmatpush1.msra.mxu0 %v320
  %433 = vmatprep.subr.mxu0 0.0
  %434 = vmatpush1.msra.mxu0 %v321
  %435 = vmatprep.subr.mxu0 0.0
  %436 = vmatpush1.msra.mxu0 %v322
  %437 = vmatprep.subr.mxu0 0.0
  %438 = vmatpush1.msra.mxu0 %v323
  %439 = vmatprep.subr.mxu0 0.0
  %440 = vmatpush1.msra.mxu0 %v324
  %441 = vmatprep.subr.mxu0 0.0
  %442 = vmatpush1.msra.mxu0 %v325
  %443 = vmatprep.subr.mxu0 0.0
  %444 = vmatpush1.msra.mxu0 %v326
  %445 = vmatprep.subr.mxu0 0.0
  %446 = vmatpush1.msra.mxu0 %v327
  %447 = vmatprep.subr.mxu0 0.0
  %448 = vmatpush1.msra.mxu0 %v328
  %449 = vmatprep.subr.mxu0 0.0
  %450 = vmatpush1.msra.mxu0 %v329
  %451 = vmatprep.subr.mxu0 0.0
  %452 = vmatpush1.msra.mxu0 %v330
  %453 = vmatprep.subr.mxu0 0.0
  %454 = vmatpush1.msra.mxu0 %v331
  %455 = vmatprep.subr.mxu0 0.0
  %456 = vmatpush1.msra.mxu0 %v332
  %457 = vmatprep.subr.mxu0 0.0
  %458 = vmatpush1.msra.mxu0 %v333
  %459 = vmatprep.subr.mxu0 0.0
  %460 = vmatpush1.msra.mxu0 %v334
  %461 = vmatprep.subr.mxu0 0.0
  %462 = vmatpush1.msra.mxu0 %v335
  %463 = vmatprep.subr.mxu0 0.0
  %464 = vmatpush1.msra.mxu0 %v336
  %465 = vmatprep.subr.mxu0 0.0
  %466 = vmatpush1.msra.mxu0 %v337
  %467 = vmatprep.subr.mxu0 0.0
  %468 = vmatpush1.msra.mxu0 %v338
  %469 = vmatprep.subr.mxu0 0.0
  %470 = vmatpush1.msra.mxu0 %v339
  %471 = vmatprep.subr.mxu0 0.0
  %472 = vmatpush1.msra.mxu0 %v340
  %473 = vmatprep.subr.mxu0 0.0
  %474 = vmatpush1.msra.mxu0 %v341
  %475 = vmatprep.subr.mxu0 0.0
  %476 = vmatpush1.msra.mxu0 %v342
  %477 = vmatprep.subr.mxu0 0.0
  %478 = vmatpush1.msra.mxu0 %v343
  %479 = vmatprep.subr.mxu0 0.0
  %480 = vmatpush1.msra.mxu0 %v344
  %481 = vmatprep.subr.mxu0 0.0
  %482 = vmatpush1.msra.mxu0 %v345
  %483 = vmatprep.subr.mxu0 0.0
  %484 = vmatpush1.msra.mxu0 %v346
  %485 = vmatprep.subr.mxu0 0.0
  %486 = vmatpush1.msra.mxu0 %v347
  %487 = vmatprep.subr.mxu0 0.0
  %488 = vmatpush1.msra.mxu0 %v348
  %489 = vmatprep.subr.mxu0 0.0
  %490 = vmatpush1.msra.mxu0 %v349
  %491 = vmatprep.mubr.f32.mxu0 %v284
  %492 = vmatmul.mubr.f32.gmra.mrb[0].mxu0 %v282
  %v493 = vpop.f32.mrb[0].mxu0
  %v494 = vadd.f32 %v424, %v493
  %v495 = vpop.f32.mrb[0].mxu0
  %496 = vdwg.mxu0
  %497 = vst [vmem:[%s5] sm:$0xff] %v494
  // Predicated region
  $region22: #{discriminator_forward.1} parent=0 // pred_check
    _
  $region23: #{discriminator_forward.1} parent=0 // pred_check_branch
    %499 = sbr.rel (0) target = $region25
  $region24: #{discriminator_forward.1} parent=0 // pred_region
    _
  $region25: #{discriminator_forward.1} parent=0 // pred_fallthru
    _
  // Predicated region
  $region26: #{discriminator_forward.1} parent=0 // pred_check
    _
  $region27: #{discriminator_forward.1} parent=0 // pred_check_branch
    %501 = sbr.rel (0) target = $region29
  $region28: #{discriminator_forward.1} parent=0 // pred_region
    _
  $region29: #{discriminator_forward.1} parent=0 // pred_fallthru
    _

</llo_original>
